<compile_context>
chip_gen: v7x
topology: tpu7x:2x2x1
jax: 0.10.0
libtpu: 0.0.40
codegen_flags: <defaults>
</compile_context>

<pallas_src>
import functools

import jax
import jax.numpy as jnp
from jax.experimental import pallas as pl
from jax.experimental.pallas import tpu as pltpu


def _round_up(x, m):
    return ((x + m - 1) // m) * m


# ----------------------------------------------------------------------------
# Pallas kernel: x(bf16, resident) @ W'(bf16, streamed over K) accumulated in
# f32 directly into the output block (resident across the K grid axis).
# Bias is written into the accumulator at k == 0.  Grid = (D blocks, K blocks).
# ----------------------------------------------------------------------------
def _faceid_kernel(x_ref, w_ref, b_ref, o_ref, *, tile_k, k_valid):
    k = pl.program_id(1)
    nk = pl.num_programs(1)

    @pl.when(k == 0)
    def _init():
        # Accumulator starts at the (folded) bias -> no separate finalize pass needed.
        o_ref[...] = jnp.zeros_like(o_ref) + b_ref[...]

    start = pl.multiple_of(k * tile_k, 128)
    x = x_ref[:, pl.ds(start, tile_k)]
    w = w_ref[...]

    rem = k_valid % tile_k
    if rem != 0:
        # Ragged last K tile: rows >= rem of the DMA'd weight block are stale/undefined.
        # Mask them to zero (x columns in that range are already zero-padded).
        rows = jax.lax.broadcasted_iota(jnp.int32, w.shape, 0)
        bound = jnp.where(k == nk - 1, rem, tile_k)
        w = jnp.where(rows < bound, w, jnp.zeros_like(w))

    o_ref[...] += jnp.dot(x, w, preferred_element_type=jnp.float32)


def faceid_pallas(x_flat, params, *, normalize=True, tile_k=8192, d_blocks=2):
    """x_flat: (N, K) f32 CHW-flattened [0,1] pixels.

    params: dict from fold_normalization (pre-padded bf16 W', f32 b', true K/D).
    Returns (N, D) f32 latent, optionally row-wise L2-normalized (F.normalize semantics).
    """
    N, K = x_flat.shape
    w_p = params["w"]          # (Kp, Dp) bf16, padded + Normalize-folded at init
    b_p = params["b"]          # (1, Dp)  f32, padded + Normalize-folded at init
    Kp, Dp = w_p.shape
    D = params["d"]
    assert K == params["k"], (K, params["k"])

    # ---- tiling geometry (all static) ------------------------------------
    tile_k = _round_up(max(128, min(tile_k, Kp)), 128)
    grid_k = pl.cdiv(Kp, tile_k)
    Kx = grid_k * tile_k                    # activation columns incl. ragged-tile padding
    Np = _round_up(N, 16)                   # full bf16 sublane packing

    d_eff = max(1, d_blocks)
    while d_eff > 1 and Dp % (128 * d_eff) != 0:
        d_eff -= 1                          # keep D blocks lane-aligned
    d_blk = Dp // d_eff

    # x is tiny; per-call pad/cast is negligible HBM traffic.
    x_p = jnp.pad(x_flat, ((0, Np - N), (0, Kx - K))).astype(jnp.bfloat16)

    # VMEM budget: double-buffered weight tiles + resident activations + output + bias.
    est = (2 * tile_k * d_blk * 2
           + 2 * Np * Kx * 2
           + 2 * Np * d_blk * 4
           + 2 * d_blk * 4)
    vmem_limit = int(min(max(2 * est, 32 << 20), 48 << 20))

    out = pl.pallas_call(
        functools.partial(_faceid_kernel, tile_k=tile_k, k_valid=Kp),
        out_shape=jax.ShapeDtypeStruct((Np, Dp), jnp.float32),
        grid_spec=pltpu.PrefetchScalarGridSpec(
            num_scalar_prefetch=0,
            grid=(d_eff, grid_k),
            in_specs=[
                pl.BlockSpec((Np, Kx), lambda d, k: (0, 0)),        # activations, resident
                pl.BlockSpec((tile_k, d_blk), lambda d, k: (k, d)),  # bf16 weight tile (streamed)
                pl.BlockSpec((1, d_blk), lambda d, k: (0, d)),       # folded bias
            ],
            out_specs=pl.BlockSpec((Np, d_blk), lambda d, k: (0, d)),  # output == accumulator
        ),
        compiler_params=pltpu.CompilerParams(
            dimension_semantics=("parallel", "arbitrary"),  # D blocks parallel (v7x), K reduction
            vmem_limit_bytes=vmem_limit,
        ),
    )(x_p, w_p, b_p)

    latent = out[:N, :D]
    if normalize:
        # F.normalize(p=2, dim=1): x / max(||x||, 1e-12) == x * rsqrt(max(sum(x^2), 1e-24)).
        ssq = jnp.sum(latent * latent, axis=1, keepdims=True)
        latent = latent * jax.lax.rsqrt(jnp.maximum(ssq, 1e-24))
    return latent


# ----------------------------------------------------------------------------
# Glue: ToTensor layout change, nearest-neighbour resize, parameter folding.
# ----------------------------------------------------------------------------
def nearest_resize_nchw(x, out_hw):
    """PyTorch F.interpolate(mode='nearest') on NCHW input (floor index rule)."""
    N, C, H, W = x.shape
    Ho, Wo = out_hw
    row_idx = (jnp.arange(Ho) * H // Ho).astype(jnp.int32)
    col_idx = (jnp.arange(Wo) * W // Wo).astype(jnp.int32)
    x = jnp.take(x, row_idx, axis=2)
    x = jnp.take(x, col_idx, axis=3)
    return x


def fold_normalization(w, b, input_shape):
    """Fold per-channel (x - mean)/std into the linear head and pre-pad/cast for the kernel.

    Done ONCE at init (not per call).  w: (K, D) f32 with K = 3*Hs*Ws (CHW-flattened),
    b: (1, D) f32.  Returns bf16 W' padded to (Kp, Dp) and f32 b' padded to (1, Dp) such that
    xn @ W + b == x @ W' + b' (in f32 math), plus the true K/D for un-padding.
    """
    Hs, Ws = input_shape
    K, D = w.shape
    assert K == 3 * Hs * Ws, (K, 3 * Hs * Ws)
    mean = jnp.asarray([0.485, 0.456, 0.406], jnp.float32)
    std = jnp.asarray([0.229, 0.224, 0.225], jnp.float32)
    mean_vec = jnp.repeat(mean, Hs * Ws)          # (K,)
    stdinv_vec = jnp.repeat(1.0 / std, Hs * Ws)   # (K,)
    w_folded = w * stdinv_vec[:, None]
    b_folded = b - (mean_vec * stdinv_vec)[None, :] @ w

    Kp = _round_up(K, 128)                        # minimal K padding (no tile-size coupling)
    Dp = _round_up(D, 128)                        # lane-dense output columns
    w_p = jnp.pad(w_folded, ((0, Kp - K), (0, Dp - D))).astype(jnp.bfloat16)
    b_p = jnp.pad(b_folded.astype(jnp.float32), ((0, 0), (0, Dp - D)))
    return {"w": w_p, "b": b_p, "k": K, "d": D}


def faceid_forward(imgs_hwc_u8, params, input_shape=(16, 16), normalize=True, **kw):
    """imgs_hwc_u8: (N, H, W, C) uint8 frames (as fed to the torchvision transform)."""
    # ToTensor: HWC uint8 -> CHW float32 in [0, 1]
    x = imgs_hwc_u8.astype(jnp.float32) / 255.0
    x = jnp.transpose(x, (0, 3, 1, 2))  # NCHW
    # F.interpolate(size=input_shape), nearest
    x = nearest_resize_nchw(x, input_shape)
    N = x.shape[0]
    x_flat = x.reshape(N, -1)
    # Normalize(mean, std) is already folded into params["w"] / params["b"].
    return faceid_pallas(x_flat, params, normalize=normalize, **kw)


def init_params(key, in_features, embed_dim):
    kw, kb = jax.random.split(key)
    w = jax.random.normal(kw, (in_features, embed_dim), jnp.float32) * 0.02
    b = jax.random.normal(kb, (1, embed_dim), jnp.float32) * 0.01
    return {"w": w, "b": b}


if __name__ == "__main__":
    key = jax.random.PRNGKey(0)
    k_img, k_par = jax.random.split(key)

    # small stand-ins: 2 RGB frames of 20x24, resized to 16x16 (instead of 112x112),
    # embedding dim 256 (instead of 512; large enough to exercise the D split)
    N, H, W, C = 2, 20, 24, 3
    INPUT_SHAPE = (16, 16)
    EMBED_DIM = 256
    K = C * INPUT_SHAPE[0] * INPUT_SHAPE[1]

    imgs = jax.random.randint(k_img, (N, H, W, C), 0, 256, dtype=jnp.int32).astype(jnp.uint8)
    raw_params = init_params(k_par, K, EMBED_DIM)
    params = fold_normalization(raw_params["w"], raw_params["b"], INPUT_SHAPE)

    # tile_k=512 forces a multi-step K reduction with a ragged (masked) last tile.
    out = faceid_forward(imgs, params, input_shape=INPUT_SHAPE, normalize=True, tile_k=512)
    out = jax.block_until_ready(out)
    # default tile_k: single-tile reduction path.
    out_raw = faceid_forward(imgs, params, input_shape=INPUT_SHAPE, normalize=False)
    out_raw = jax.block_until_ready(out_raw)
    assert out.shape == (N, EMBED_DIM)
    assert out_raw.shape == (N, EMBED_DIM)

    # --- references ---------------------------------------------------------
    x = imgs.astype(jnp.float32) / 255.0
    x = jnp.transpose(x, (0, 3, 1, 2))
    x = nearest_resize_nchw(x, INPUT_SHAPE)
    x_flat = x.reshape(N, -1)

    # (a) same-precision reference of the kernel path (bf16 inputs, f32 accumulation)
    xb = x_flat.astype(jnp.bfloat16).astype(jnp.float32)
    wb = params["w"][:K, :EMBED_DIM].astype(jnp.float32)
    bb = params["b"][:, :EMBED_DIM]
    lat = xb @ wb + bb
    ref = lat / jnp.maximum(jnp.linalg.norm(lat, axis=1, keepdims=True), 1e-12)
    assert jnp.allclose(out, ref, atol=1e-3, rtol=1e-3), "mismatch vs same-precision reference"
    assert jnp.allclose(out_raw, lat, atol=1e-3, rtol=1e-3), "normalize=False path mismatch"

    # (b) semantic reference of the original PyTorch forward (full f32, un-folded Normalize)
    mean = jnp.asarray([0.485, 0.456, 0.406], jnp.float32).reshape(1, 3, 1, 1)
    std = jnp.asarray([0.229, 0.224, 0.225], jnp.float32).reshape(1, 3, 1, 1)
    xn = ((x - mean) / std).reshape(N, -1)
    lat_f32 = xn @ raw_params["w"] + raw_params["b"]
    ref_f32 = lat_f32 / jnp.maximum(jnp.linalg.norm(lat_f32, axis=1, keepdims=True), 1e-12)
    assert jnp.allclose(out, ref_f32, atol=3e-2, rtol=3e-2), "mismatch vs f32 semantic reference"

    print("KERNEL_OK")
</pallas_src>

<mosaic_0001>
module attributes {stable_mosaic.version = 11 : i64} {
  func.func @_faceid_kernel(%arg0: i32, %arg1: i32, %arg2: memref<16x1024xbf16, #tpu.memory_space<vmem>>, %arg3: memref<512x128xbf16, #tpu.memory_space<vmem>>, %arg4: memref<1x128xf32, #tpu.memory_space<vmem>>, %arg5: memref<16x128xf32, #tpu.memory_space<vmem>>) attributes {dimension_semantics = [#tpu.dimension_semantics<parallel>, #tpu.dimension_semantics<arbitrary>], iteration_bounds = array<i64: 2, 2>, scalar_prefetch = 0 : i64, scratch_operands = 0 : i64, tpu.core_type = #tpu.core_type<tc>, window_params = [{pipeline_mode = #tpu.pipeline_mode<synchronous>, transform_indices = @transform_0, window_bounds = array<i64: 16, 1024>}, {transform_indices = @transform_1, window_bounds = array<i64: 512, 128>}, {transform_indices = @transform_2, window_bounds = array<i64: 1, 128>}, {transform_indices = @transform_3, window_bounds = array<i64: 16, 128>}]} {
    %c0_i32 = arith.constant 0 : i32
    %0 = arith.cmpi eq, %arg1, %c0_i32 : i32
    %1 = arith.extui %0 : i1 to i32
    %c0_i32_0 = arith.constant 0 : i32
    %2 = arith.cmpi ne, %1, %c0_i32_0 : i32
    scf.if %2 {
      %cst_9 = arith.constant 0.000000e+00 : f32
      %19 = vector.broadcast %cst_9 : f32 to vector<16x128xf32>
      %c0_10 = arith.constant 0 : index
      %c0_11 = arith.constant 0 : index
      %20 = vector.load %arg4[%c0_10, %c0_11] : memref<1x128xf32, #tpu.memory_space<vmem>>, vector<1x128xf32>
      %21 = vector.broadcast %20 : vector<1x128xf32> to vector<16x128xf32>
      %22 = arith.addf %19, %21 : vector<16x128xf32>
      %c0_12 = arith.constant 0 : index
      %c0_13 = arith.constant 0 : index
      %23 = vector.load %arg5[%c0_12, %c0_13] : memref<16x128xf32, #tpu.memory_space<vmem>>, vector<16x128xf32>
      tpu.vector_store %arg5[%c0_12, %c0_13], %22 {strides = array<i32>} : memref<16x128xf32, #tpu.memory_space<vmem>>, vector<16x128xf32>,
    } else {
    }
    %c512_i32 = arith.constant 512 : i32
    %3 = arith.muli %arg1, %c512_i32 : i32
    %4 = tpu.assume_multiple %3, 128 : i32
    %c0 = arith.constant 0 : index
    %5 = arith.index_cast %4 : i32 to index
    %6 = vector.load %arg2[%c0, %5] : memref<16x1024xbf16, #tpu.memory_space<vmem>>, vector<16x512xbf16>
    %c0_1 = arith.constant 0 : index
    %c0_2 = arith.constant 0 : index
    %7 = vector.load %arg3[%c0_1, %c0_2] : memref<512x128xbf16, #tpu.memory_space<vmem>>, vector<512x128xbf16>
    %8 = tpu.iota {dimensions = array<i32: 0>} : vector<512x128xi32>
    %c1_i32 = arith.constant 1 : i32
    %9 = arith.cmpi eq, %arg1, %c1_i32 : i32
    %c256_i32 = arith.constant 256 : i32
    %c512_i32_3 = arith.constant 512 : i32
    %10 = arith.select %9, %c256_i32, %c512_i32_3 : i32
    %11 = vector.broadcast %10 : i32 to vector<512x128xi32>
    %12 = arith.cmpi slt, %8, %11 : vector<512x128xi32>
    %cst = arith.constant 0.000000e+00 : bf16
    %13 = vector.broadcast %cst : bf16 to vector<512x128xbf16>
    %14 = arith.select %12, %7, %13 : vector<512x128xi1>, vector<512x128xbf16>
    %c0_4 = arith.constant 0 : index
    %c0_5 = arith.constant 0 : index
    %15 = vector.load %arg5[%c0_4, %c0_5] : memref<16x128xf32, #tpu.memory_space<vmem>>, vector<16x128xf32>
    %cst_6 = arith.constant dense<0.000000e+00> : vector<16x128xf32>
    %16 = tpu.matmul %6, %14, %cst_6 {dimension_numbers = #tpu.dot_dimension_numbers<[1], [0], [0], [1], [0, 0, 1, 1], [], []>} : vector<16x512xbf16>, vector<512x128xbf16>, vector<16x128xf32> -> vector<16x128xf32>
    %17 = arith.addf %15, %16 : vector<16x128xf32>
    %c0_7 = arith.constant 0 : index
    %c0_8 = arith.constant 0 : index
    %18 = vector.load %arg5[%c0_7, %c0_8] : memref<16x128xf32, #tpu.memory_space<vmem>>, vector<16x128xf32>
    tpu.vector_store %arg5[%c0_7, %c0_8], %17 {strides = array<i32>} : memref<16x128xf32, #tpu.memory_space<vmem>>, vector<16x128xf32>,
    return
  }
  func.func @transform_0(%arg0: i32, %arg1: i32) -> (i32, i32) {
    %c0_i32 = arith.constant 0 : i32
    %c0_i32_0 = arith.constant 0 : i32
    %c0_i32_1 = arith.constant 0 : i32
    return %c0_i32, %c0_i32_0 : i32, i32
  }
  func.func @transform_1(%arg0: i32, %arg1: i32) -> (i32, i32) {
    %c0_i32 = arith.constant 0 : i32
    return %arg1, %arg0 : i32, i32
  }
  func.func @transform_2(%arg0: i32, %arg1: i32) -> (i32, i32) {
    %c0_i32 = arith.constant 0 : i32
    %c0_i32_0 = arith.constant 0 : i32
    return %c0_i32, %arg0 : i32, i32
  }
  func.func @transform_3(%arg0: i32, %arg1: i32) -> (i32, i32) {
    %c0_i32 = arith.constant 0 : i32
    %c0_i32_0 = arith.constant 0 : i32
    return %c0_i32, %arg0 : i32, i32
  }
}

</mosaic_0001>

<llo_original>
// kernel: tpu_custom_call.1
$region0: #{tpu_custom_call.1}
  #allocation0 [shape = 'u32[]', space=smem, size = 0x4, offset = 0x4, fixed_abs, tag = 'smem constant byte address 0x4 - core index']
  #allocation1 [shape = 'u32[144,128]{1,0:T(1,128)}', space=vmem, size = 0x12000, scoped, tag = 'internal scratch']
  %s0 = inlined_call_operand.hbm [shape: bf16[16,1024], index: 0, kind: input, shape index: {}]
  %s1 = inlined_call_operand.hbm [shape: bf16[768,256], index: 1, kind: input, shape index: {}]
  %s2 = inlined_call_operand.vmem [shape: f32[1,256], index: 2, kind: input, shape index: {}]
  %s3 = inlined_call_operand.hbm [shape: f32[16,256], index: 3, kind: output, shape index: {}]
  %s4 = sld [smem:[#allocation0]]
  $region57: #{tpu_custom_call.1} parent=0
    _
  %s6 = ssub.s32 1, %s4
  %s7 = scalar_select 0, %s6, %s4
  $region1: #{tpu_custom_call.1} parent=0
    #allocation2 [shape = 'u8[32768]{0}', space=vmem, size = 0x8000, scoped, tag = 'input window, operand 0, single buffered']
    #allocation3 [shape = 's32[2]{0}', space=sflag, size = 0x8, scoped, tag = 'scoped memory for tpu_custom_call.1']
    #allocation4 [shape = 's32[2]{0}', space=sflag, size = 0x8, scoped, tag = 'scoped memory for tpu_custom_call.1']
    #allocation5 [shape = 'u8[262144]{0}', space=vmem, size = 0x40000, scoped, tag = 'input window, operand 1']
    #allocation6 [shape = 's32[2]{0}', space=sflag, size = 0x8, scoped, tag = 'scoped memory for tpu_custom_call.1']
    #allocation7 [shape = 'u8[16384]{0}', space=vmem, size = 0x4000, scoped, tag = 'output window, operand 0']
    %8 = vsyncpa [#allocation3], 0
    %9 = vsyncpa [#allocation6], 0
    %s10 = scalar_lea.sflag [#allocation6], 1
    %11 = vsyncpa %s10, 0
    %12 = vsyncpa [#allocation4], 0
    %s13 = scalar_lea.sflag [#allocation4], 1
    %14 = vsyncpa %s13, 0
    loop: start=0, step=1, limit=6
    $region2: #{tpu_custom_call.1} parent=1 // loop_pre_header
      _
    $region3: #{tpu_custom_call.1} parent=1 // loop_header
      %s16 = sphi 0, %s20
      %p17 = scmp.ge.s32.totalorder %s16, 6
      %s23 = sphi 0, %s35
      %s24 = sphi 0, %s31
      %s25 = sphi 0, %s23
      %s26 = sphi 0, %s24
      %s27 = sphi 0, %s25
      %s28 = sphi 0, %s26
      %s36 = sphi 0, %s36
      %s38 = sphi 0, %s36
      %s39 = sphi 0, %s38
      %s53 = sphi 0, %s39
      %s61 = sphi 0, %s63
      %s64 = sphi 0, %s61
      %s65 = sphi 0, %s64
      %s81 = sphi 0, %s65
      %s87 = sphi 0, %s89
      %s90 = sphi 0, %s87
      %s91 = sphi 0, %s90
      %s107 = sphi 0, %s91
      %s113 = sphi 0, %s115
      %s116 = sphi 0, %s113
      %s117 = sphi 0, %s116
      %s133 = sphi 0, %s117
    $region4: #{tpu_custom_call.1} parent=1 // loop_header_branch
      %19 = sbr.rel (%p17) target = $region8
    $region5: #{tpu_custom_call.1} parent=1 // loop_body
      %s21 = ssub.s32 %s16, 1
      %s22 = ssub.s32 %s16, 2
      %s29 = sadd.s32 1, %s24
      %p30 = scmp.ge.s32.totalorder %s29, 2
      %s31 = scalar_select %p30, 0, %s29
      %s32 = sadd.s32 1, %s23
      %s33 = scalar_select %p30, %s32, %s23
      %p34 = scmp.ge.s32.totalorder %s33, 2
      %s35 = scalar_select %p34, 0, %s33
      %s37 = sadd.s32 %s36, 1
      %p40 = scmp.eq.s32.totalorder %s16, 3
      %p41 = scmp.ne.s32.totalorder %s36, %s38
      %p42 = scmp.eq.s32.totalorder %s16, 0
      %p43 = por %p41, %p42
      %p44 = scmp.ne.s32.totalorder %s36, %s38
      %p45 = scmp.eq.s32.totalorder %s21, 3
      %p46 = por %p44, %p45
      %p47 = scmp.ne.s32.totalorder %s38, %s39
      %p48 = scmp.eq.s32.totalorder %s21, 0
      %p49 = por %p47, %p48
      %p50 = scmp.ne.s32.totalorder %s38, %s39
      %p51 = scmp.eq.s32.totalorder %s22, 3
      %p52 = por %p50, %p51
      %p54 = scmp.ne.s32.totalorder %s39, %s53
      %p55 = scmp.eq.s32.totalorder %s22, 0
      %p56 = por %p54, %p55
      %s57 = ssub.s32 %s24, %s31
      %s58 = ssub.s32 %s23, %s35
      %s59 = sor.u32 %s57, %s58
      %p60 = scmp.eq.s32.totalorder %s59, 0
      %s62 = sadd.s32 %s61, 1
      %s63 = scalar_select %p60, %s61, %s62
      %p66 = pneg %p60
      %p67 = scmp.eq.s32.totalorder %s16, 3
      %p68 = por %p66, %p67
      %p69 = scmp.ne.s32.totalorder %s61, %s64
      %p70 = scmp.eq.s32.totalorder %s16, 0
      %p71 = por %p69, %p70
      %p72 = scmp.ne.s32.totalorder %s61, %s64
      %p73 = scmp.eq.s32.totalorder %s21, 3
      %p74 = por %p72, %p73
      %p75 = scmp.ne.s32.totalorder %s64, %s65
      %p76 = scmp.eq.s32.totalorder %s21, 0
      %p77 = por %p75, %p76
      %p78 = scmp.ne.s32.totalorder %s64, %s65
      %p79 = scmp.eq.s32.totalorder %s22, 3
      %p80 = por %p78, %p79
      %p82 = scmp.ne.s32.totalorder %s65, %s81
      %p83 = scmp.eq.s32.totalorder %s22, 0
      %p84 = por %p82, %p83
      %s85 = ssub.s32 %s23, %s35
      %p86 = scmp.eq.s32.totalorder %s85, 0
      %s88 = sadd.s32 %s87, 1
      %s89 = scalar_select %p86, %s87, %s88
      %p92 = pneg %p86
      %p93 = scmp.eq.s32.totalorder %s16, 3
      %p94 = por %p92, %p93
      %p95 = scmp.ne.s32.totalorder %s87, %s90
      %p96 = scmp.eq.s32.totalorder %s16, 0
      %p97 = por %p95, %p96
      %p98 = scmp.ne.s32.totalorder %s87, %s90
      %p99 = scmp.eq.s32.totalorder %s21, 3
      %p100 = por %p98, %p99
      %p101 = scmp.ne.s32.totalorder %s90, %s91
      %p102 = scmp.eq.s32.totalorder %s21, 0
      %p103 = por %p101, %p102
      %p104 = scmp.ne.s32.totalorder %s90, %s91
      %p105 = scmp.eq.s32.totalorder %s22, 3
      %p106 = por %p104, %p105
      %p108 = scmp.ne.s32.totalorder %s91, %s107
      %p109 = scmp.eq.s32.totalorder %s22, 0
      %p110 = por %p108, %p109
      %s111 = ssub.s32 %s23, %s35
      %p112 = scmp.eq.s32.totalorder %s111, 0
      %s114 = sadd.s32 %s113, 1
      %s115 = scalar_select %p112, %s113, %s114
      %p118 = pneg %p112
      %p119 = scmp.eq.s32.totalorder %s16, 3
      %p120 = por %p118, %p119
      %p121 = scmp.ne.s32.totalorder %s113, %s116
      %p122 = scmp.eq.s32.totalorder %s16, 0
      %p123 = por %p121, %p122
      %p124 = scmp.ne.s32.totalorder %s113, %s116
      %p125 = scmp.eq.s32.totalorder %s21, 3
      %p126 = por %p124, %p125
      %p127 = scmp.ne.s32.totalorder %s116, %s117
      %p128 = scmp.eq.s32.totalorder %s21, 0
      %p129 = por %p127, %p128
      %p130 = scmp.ne.s32.totalorder %s116, %s117
      %p131 = scmp.eq.s32.totalorder %s22, 3
      %p132 = por %p130, %p131
      %p134 = scmp.ne.s32.totalorder %s117, %s133
      %p135 = scmp.eq.s32.totalorder %s22, 0
      %p136 = por %p134, %p135
      %p137 = scmp.le.s32.totalorder 1, %s16
      %p138 = scmp.lt.s32.totalorder %s16, 5
      %p139 = pnand %p137, %p138
      %p140 = pneg %p139
      // Predicated region
      $region9: #{tpu_custom_call.1} parent=5 // pred_check
        _
      $region10: #{tpu_custom_call.1} parent=5 // pred_check_branch
        %142 = sbr.rel (%p139) target = $region12
      $region11: #{tpu_custom_call.1} parent=5 // pred_region
        %s143 = ssub.s32 %s16, 1
        // Predicated region
        $region13: #{tpu_custom_call.1} parent=11 // pred_check
          %p144 = pneg %p49
        $region14: #{tpu_custom_call.1} parent=11 // pred_check_branch
          %146 = sbr.rel (%p144) target = $region16
        $region15: #{tpu_custom_call.1} parent=11 // pred_region
          %s148 = ssub.s32 1024, 1024
          %149 = vsyncadd [#allocation3], %s148
          %s150 = sshll.u32 [#allocation2], 4
          %s151 = int_to_ptr.vmem [resolvable:$true] %s150
          %156 = dma.hbm_to_vmem [thread:$0]  %s0, 1024, %s151, [#allocation3], 512, 512, 32
        $region16: #{tpu_custom_call.1} parent=11 // pred_fallthru
          _
      $region12: #{tpu_custom_call.1} parent=5 // pred_fallthru
        _
      %p157 = scmp.lt.s32.totalorder %s16, 4
      // Predicated region
      $region17: #{tpu_custom_call.1} parent=5 // pred_check
        %p158 = pneg %p157
      $region18: #{tpu_custom_call.1} parent=5 // pred_check_branch
        %160 = sbr.rel (%p158) target = $region20
      $region19: #{tpu_custom_call.1} parent=5 // pred_region
        // Predicated region
        $region21: #{tpu_custom_call.1} parent=19 // pred_check
          %p161 = pneg %p71
        $region22: #{tpu_custom_call.1} parent=19 // pred_check_branch
          %163 = sbr.rel (%p161) target = $region24
        $region23: #{tpu_custom_call.1} parent=19 // pred_region
          %s164 = sand.u32 %s61, 1
          %s165 = scalar_lea.sflag [#allocation6], %s164
          %s166 = sand.u32 %s61, 1
          %s167 = smul.addr %s166, 256
          %s168 = scalar_lea.vmem [#allocation5], %s167
          %s169 = smul.u32 64, %s24
          %s170 = ssub.s32 96, %s169
          %p171 = scmp.lt.s32.totalorder %s170, 64
          %s172 = scalar_select %p171, %s170, 64
          %s173 = smul.u32 64, %s172
          %s175 = ssub.s32 4096, %s173
          %176 = vsyncadd %s165, %s175
          %p177 = scmp.ne.s32.totalorder 0, %s173
          %s178 = smul.addr %s169, 2
          %s179 = sadd.s32 %s23, %s178
          %s180 = smul.addr %s179, 64
          %s181 = scalar_lea.hbm %s1, %s180
          %s182 = smul.u32 4, %s172
          %s183 = sshll.u32 %s168, 4
          %s184 = int_to_ptr.vmem [resolvable:$true] %s183
          %s185 = sshll.u32 %s182, 4
          %189 = dma.hbm_to_vmem [thread:$0]  (%p177), %s181, %s185, %s184, %s165, 128, 64, 4
        $region24: #{tpu_custom_call.1} parent=19 // pred_fallthru
          _
        // Predicated region
        $region25: #{tpu_custom_call.1} parent=19 // pred_check
          %p190 = pneg %p97
        $region26: #{tpu_custom_call.1} parent=19 // pred_check_branch
          %192 = sbr.rel (%p190) target = $region28
        $region27: #{tpu_custom_call.1} parent=19 // pred_region
          %p193 = scmp.lt.s32.totalorder %s23, 1
          %s194 = scalar_select %p193, %s23, 1
          %s195 = scalar_lea.vmem %s2, %s194
        $region28: #{tpu_custom_call.1} parent=19 // pred_fallthru
          _
      $region20: #{tpu_custom_call.1} parent=5 // pred_fallthru
        _
      %p196 = scmp.le.s32.totalorder 1, %s16
      %p197 = scmp.lt.s32.totalorder %s16, 5
      %p198 = pnand %p196, %p197
      %p199 = pneg %p198
      // Predicated region
      $region29: #{tpu_custom_call.1} parent=5 // pred_check
        _
      $region30: #{tpu_custom_call.1} parent=5 // pred_check_branch
        %201 = sbr.rel (%p198) target = $region32
      $region31: #{tpu_custom_call.1} parent=5 // pred_region
        %s202 = ssub.s32 %s16, 1
        // Predicated region
        $region33: #{tpu_custom_call.1} parent=31 // pred_check
          %p203 = pneg %p49
        $region34: #{tpu_custom_call.1} parent=31 // pred_check_branch
          %205 = sbr.rel (%p203) target = $region36
        $region35: #{tpu_custom_call.1} parent=31 // pred_region
          %206 = dma.done [#allocation3], 1024
        $region36: #{tpu_custom_call.1} parent=31 // pred_fallthru
          _
        %s207 = sand.u32 %s64, 1
        %s208 = scalar_lea.sflag [#allocation6], %s207
        %s209 = sand.u32 %s64, 1
        %s210 = smul.addr %s209, 256
        %s211 = scalar_lea.vmem [#allocation5], %s210
        // Predicated region
        $region37: #{tpu_custom_call.1} parent=31 // pred_check
          %p212 = pneg %p77
        $region38: #{tpu_custom_call.1} parent=31 // pred_check_branch
          %214 = sbr.rel (%p212) target = $region40
        $region39: #{tpu_custom_call.1} parent=31 // pred_region
          %215 = dma.done %s208, 4096
        $region40: #{tpu_custom_call.1} parent=31 // pred_fallthru
          _
        %p216 = pneg %p49
        %p217 = pneg %p46
        %s218 = sand.u32 %s64, 1
        %s219 = scalar_lea.sflag [#allocation6], %s218
        %s220 = sand.u32 %s64, 1
        %s221 = smul.addr %s220, 256
        %s222 = scalar_lea.vmem [#allocation5], %s221
        %p223 = pneg %p77
        %p224 = pneg %p74
        %p225 = scmp.lt.s32.totalorder %s25, 1
        %s226 = scalar_select %p225, %s25, 1
        %s227 = scalar_lea.vmem %s2, %s226
        %p228 = pneg %p103
        %p229 = pneg %p100
        %p230 = pneg %p129
        %p231 = pneg %p126
        %s232 = sand.u32 %s116, 1
        %s233 = scalar_lea.sflag [#allocation4], %s232
        %s234 = sand.u32 %s116, 1
        %s235 = smul.addr %s234, 16
        %s236 = scalar_lea.vmem [#allocation7], %s235
        %s237 = smul.u32 64, %s26
        %s238 = ssub.s32 96, %s237
        %p239 = scmp.lt.s32.totalorder %s238, 64
        %s240 = scalar_select %p239, %s238, 64
        %s241 = smul.u32 64, %s240
        %p242 = scmp.lt.s32.totalorder %s25, 1
        %s243 = scalar_select %p242, %s25, 1
        %s244 = scalar_lea.vmem %s2, %s243
        %p246 = scmp.eq.s32.totalorder %s26, 0
        // Predicated region
        $region41: #{tpu_custom_call.1} parent=31 // pred_check
          %p247 = pneg %p246
        $region42: #{tpu_custom_call.1} parent=31 // pred_check_branch
          %249 = sbr.rel (%p247) target = $region44
        $region43: #{tpu_custom_call.1} parent=31 // pred_region
          %v250 = vld [vmem:[%s244] sm:$0x1]
          %v252 = vlaneseq
          %v253 = vshrl.u32 %v252, 7
          %v254 = vsub.s32 0, %v253
          %v255 = vrot.slane %v250, %v254
          %v257 = vadd.f32 %v255, 0.0
          %258 = vst [vmem:[%s236] sm:$0xff] %v257
          %259 = vst [vmem:[%s236 + $0x8] sm:$0xff] %v257
        $region44: #{tpu_custom_call.1} parent=31 // pred_fallthru
          _
        %s260 = smul.u32 %s26, 512
        %s261 = sshra.s32 %s260, 7
        %s262 = sand.u32 %s260, 127
        %s263 = smul.addr %s261, 4
        %s264 = scalar_lea.vmem [#allocation2], %s263
        %v265 = vld [vmem:[%s264] sm:$0xff]
        %v266 = vld [vmem:[%s264 + $0x8] sm:$0xff]
        %v267 = vld [vmem:[%s264 + $0x20] sm:$0xff]
        %v268 = vld [vmem:[%s264 + $0x28] sm:$0xff]
        %v269 = vld [vmem:[%s211] sm:$0xf]
        %v270 = vld [vmem:[%s211 + $0x4] sm:$0xf]
        %v271 = vld [vmem:[%s211 + $0x8] sm:$0xf]
        %v272 = vld [vmem:[%s211 + $0xc] sm:$0xf]
        %v273 = vld [vmem:[%s211 + $0x10] sm:$0xf]
        %v274 = vld [vmem:[%s211 + $0x14] sm:$0xf]
        %v275 = vld [vmem:[%s211 + $0x18] sm:$0xf]
        %v276 = vld [vmem:[%s211 + $0x1c] sm:$0xf]
        %v277 = vld [vmem:[%s211 + $0x20] sm:$0xf]
        %v278 = vld [vmem:[%s211 + $0x24] sm:$0xf]
        %v279 = vld [vmem:[%s211 + $0x28] sm:$0xf]
        %v280 = vld [vmem:[%s211 + $0x2c] sm:$0xf]
        %v281 = vld [vmem:[%s211 + $0x30] sm:$0xf]
        %v282 = vld [vmem:[%s211 + $0x34] sm:$0xf]
        %v283 = vld [vmem:[%s211 + $0x38] sm:$0xf]
        %v284 = vld [vmem:[%s211 + $0x3c] sm:$0xf]
        %v285 = vld [vmem:[%s211 + $0x40] sm:$0xf]
        %v286 = vld [vmem:[%s211 + $0x44] sm:$0xf]
        %v287 = vld [vmem:[%s211 + $0x48] sm:$0xf]
        %v288 = vld [vmem:[%s211 + $0x4c] sm:$0xf]
        %v289 = vld [vmem:[%s211 + $0x50] sm:$0xf]
        %v290 = vld [vmem:[%s211 + $0x54] sm:$0xf]
        %v291 = vld [vmem:[%s211 + $0x58] sm:$0xf]
        %v292 = vld [vmem:[%s211 + $0x5c] sm:$0xf]
        %v293 = vld [vmem:[%s211 + $0x60] sm:$0xf]
        %v294 = vld [vmem:[%s211 + $0x64] sm:$0xf]
        %v295 = vld [vmem:[%s211 + $0x68] sm:$0xf]
        %v296 = vld [vmem:[%s211 + $0x6c] sm:$0xf]
        %v297 = vld [vmem:[%s211 + $0x70] sm:$0xf]
        %v298 = vld [vmem:[%s211 + $0x74] sm:$0xf]
        %v299 = vld [vmem:[%s211 + $0x78] sm:$0xf]
        %v300 = vld [vmem:[%s211 + $0x7c] sm:$0xf]
        %v301 = vld [vmem:[%s211 + $0x80] sm:$0xf]
        %v302 = vld [vmem:[%s211 + $0x84] sm:$0xf]
        %v303 = vld [vmem:[%s211 + $0x88] sm:$0xf]
        %v304 = vld [vmem:[%s211 + $0x8c] sm:$0xf]
        %v305 = vld [vmem:[%s211 + $0x90] sm:$0xf]
        %v306 = vld [vmem:[%s211 + $0x94] sm:$0xf]
        %v307 = vld [vmem:[%s211 + $0x98] sm:$0xf]
        %v308 = vld [vmem:[%s211 + $0x9c] sm:$0xf]
        %v309 = vld [vmem:[%s211 + $0xa0] sm:$0xf]
        %v310 = vld [vmem:[%s211 + $0xa4] sm:$0xf]
        %v311 = vld [vmem:[%s211 + $0xa8] sm:$0xf]
        %v312 = vld [vmem:[%s211 + $0xac] sm:$0xf]
        %v313 = vld [vmem:[%s211 + $0xb0] sm:$0xf]
        %v314 = vld [vmem:[%s211 + $0xb4] sm:$0xf]
        %v315 = vld [vmem:[%s211 + $0xb8] sm:$0xf]
        %v316 = vld [vmem:[%s211 + $0xbc] sm:$0xf]
        %v317 = vld [vmem:[%s211 + $0xc0] sm:$0xf]
        %v318 = vld [vmem:[%s211 + $0xc4] sm:$0xf]
        %v319 = vld [vmem:[%s211 + $0xc8] sm:$0xf]
        %v320 = vld [vmem:[%s211 + $0xcc] sm:$0xf]
        %v321 = vld [vmem:[%s211 + $0xd0] sm:$0xf]
        %v322 = vld [vmem:[%s211 + $0xd4] sm:$0xf]
        %v323 = vld [vmem:[%s211 + $0xd8] sm:$0xf]
        %v324 = vld [vmem:[%s211 + $0xdc] sm:$0xf]
        %v325 = vld [vmem:[%s211 + $0xe0] sm:$0xf]
        %v326 = vld [vmem:[%s211 + $0xe4] sm:$0xf]
        %v327 = vld [vmem:[%s211 + $0xe8] sm:$0xf]
        %v328 = vld [vmem:[%s211 + $0xec] sm:$0xf]
        %v329 = vld [vmem:[%s211 + $0xf0] sm:$0xf]
        %v330 = vld [vmem:[%s211 + $0xf4] sm:$0xf]
        %v331 = vld [vmem:[%s211 + $0xf8] sm:$0xf]
        %v332 = vld [vmem:[%s211 + $0xfc] sm:$0xf]
        %v333 = vlaneseq
        %v334 = vshrl.u32 %v333, 7
        %v335 = vadd.s32 %v334, 8
        %v336 = vadd.s32 %v334, 16
        %v337 = vadd.s32 %v334, 24
        %v338 = vadd.s32 %v334, 32
        %v339 = vadd.s32 %v334, 40
        %v340 = vadd.s32 %v334, 48
        %v341 = vadd.s32 %v334, 56
        %v342 = vadd.s32 %v334, 64
        %v343 = vadd.s32 %v334, 72
        %v344 = vadd.s32 %v334, 80
        %v345 = vadd.s32 %v334, 88
        %v346 = vadd.s32 %v334, 96
        %v347 = vadd.s32 %v334, 104
        %v348 = vadd.s32 %v334, 112
        %v349 = vadd.s32 %v334, 120
        %v350 = vadd.s32 %v334, 128
        %v351 = vadd.s32 %v334, 136
        %v352 = vadd.s32 %v334, 144
        %v353 = vadd.s32 %v334, 152
        %v354 = vadd.s32 %v334, 160
        %v355 = vadd.s32 %v334, 168
        %v356 = vadd.s32 %v334, 176
        %v357 = vadd.s32 %v334, 184
        %v358 = vadd.s32 %v334, 192
        %v359 = vadd.s32 %v334, 200
        %v360 = vadd.s32 %v334, 208
        %v361 = vadd.s32 %v334, 216
        %v362 = vadd.s32 %v334, 224
        %v363 = vadd.s32 %v334, 232
        %v364 = vadd.s32 %v334, 240
        %v365 = vadd.s32 %v334, 248
        %v366 = vadd.s32 %v334, 256
        %v367 = vadd.s32 %v334, 264
        %v368 = vadd.s32 %v334, 272
        %v369 = vadd.s32 %v334, 280
        %v370 = vadd.s32 %v334, 288
        %v371 = vadd.s32 %v334, 296
        %v372 = vadd.s32 %v334, 304
        %v373 = vadd.s32 %v334, 312
        %v374 = vadd.s32 %v334, 320
        %v375 = vadd.s32 %v334, 328
        %v376 = vadd.s32 %v334, 336
        %v377 = vadd.s32 %v334, 344
        %v378 = vadd.s32 %v334, 352
        %v379 = vadd.s32 %v334, 360
        %v380 = vadd.s32 %v334, 368
        %v381 = vadd.s32 %v334, 376
        %v382 = vadd.s32 %v334, 384
        %v383 = vadd.s32 %v334, 392
        %v384 = vadd.s32 %v334, 400
        %v385 = vadd.s32 %v334, 408
        %v386 = vadd.s32 %v334, 416
        %v387 = vadd.s32 %v334, 424
        %v388 = vadd.s32 %v334, 432
        %v389 = vadd.s32 %v334, 440
        %v390 = vadd.s32 %v334, 448
        %v391 = vadd.s32 %v334, 456
        %v392 = vadd.s32 %v334, 464
        %v393 = vadd.s32 %v334, 472
        %v394 = vadd.s32 %v334, 480
        %v395 = vadd.s32 %v334, 488
        %v396 = vadd.s32 %v334, 496
        %v397 = vadd.s32 %v334, 504
        %p398 = scmp.eq.s32.totalorder %s26, 1
        %s399 = scalar_select %p398, 256, 512
        %v400 = vstv %s399
        %vm401 = vcmp.lt.s32.totalorder %v334, %v400
        %vm402 = vcmp.lt.s32.totalorder %v335, %v400
        %vm403 = vcmp.lt.s32.totalorder %v336, %v400
        %vm404 = vcmp.lt.s32.totalorder %v337, %v400
        %vm405 = vcmp.lt.s32.totalorder %v338, %v400
        %vm406 = vcmp.lt.s32.totalorder %v339, %v400
        %vm407 = vcmp.lt.s32.totalorder %v340, %v400
        %vm408 = vcmp.lt.s32.totalorder %v341, %v400
        %vm409 = vcmp.lt.s32.totalorder %v342, %v400
        %vm410 = vcmp.lt.s32.totalorder %v343, %v400
        %vm411 = vcmp.lt.s32.totalorder %v344, %v400
        %vm412 = vcmp.lt.s32.totalorder %v345, %v400
        %vm413 = vcmp.lt.s32.totalorder %v346, %v400
        %vm414 = vcmp.lt.s32.totalorder %v347, %v400
        %vm415 = vcmp.lt.s32.totalorder %v348, %v400
        %vm416 = vcmp.lt.s32.totalorder %v349, %v400
        %vm417 = vcmp.lt.s32.totalorder %v350, %v400
        %vm418 = vcmp.lt.s32.totalorder %v351, %v400
        %vm419 = vcmp.lt.s32.totalorder %v352, %v400
        %vm420 = vcmp.lt.s32.totalorder %v353, %v400
        %vm421 = vcmp.lt.s32.totalorder %v354, %v400
        %vm422 = vcmp.lt.s32.totalorder %v355, %v400
        %vm423 = vcmp.lt.s32.totalorder %v356, %v400
        %vm424 = vcmp.lt.s32.totalorder %v357, %v400
        %vm425 = vcmp.lt.s32.totalorder %v358, %v400
        %vm426 = vcmp.lt.s32.totalorder %v359, %v400
        %vm427 = vcmp.lt.s32.totalorder %v360, %v400
        %vm428 = vcmp.lt.s32.totalorder %v361, %v400
        %vm429 = vcmp.lt.s32.totalorder %v362, %v400
        %vm430 = vcmp.lt.s32.totalorder %v363, %v400
        %vm431 = vcmp.lt.s32.totalorder %v364, %v400
        %vm432 = vcmp.lt.s32.totalorder %v365, %v400
        %vm433 = vcmp.lt.s32.totalorder %v366, %v400
        %vm434 = vcmp.lt.s32.totalorder %v367, %v400
        %vm435 = vcmp.lt.s32.totalorder %v368, %v400
        %vm436 = vcmp.lt.s32.totalorder %v369, %v400
        %vm437 = vcmp.lt.s32.totalorder %v370, %v400
        %vm438 = vcmp.lt.s32.totalorder %v371, %v400
        %vm439 = vcmp.lt.s32.totalorder %v372, %v400
        %vm440 = vcmp.lt.s32.totalorder %v373, %v400
        %vm441 = vcmp.lt.s32.totalorder %v374, %v400
        %vm442 = vcmp.lt.s32.totalorder %v375, %v400
        %vm443 = vcmp.lt.s32.totalorder %v376, %v400
        %vm444 = vcmp.lt.s32.totalorder %v377, %v400
        %vm445 = vcmp.lt.s32.totalorder %v378, %v400
        %vm446 = vcmp.lt.s32.totalorder %v379, %v400
        %vm447 = vcmp.lt.s32.totalorder %v380, %v400
        %vm448 = vcmp.lt.s32.totalorder %v381, %v400
        %vm449 = vcmp.lt.s32.totalorder %v382, %v400
        %vm450 = vcmp.lt.s32.totalorder %v383, %v400
        %vm451 = vcmp.lt.s32.totalorder %v384, %v400
        %vm452 = vcmp.lt.s32.totalorder %v385, %v400
        %vm453 = vcmp.lt.s32.totalorder %v386, %v400
        %vm454 = vcmp.lt.s32.totalorder %v387, %v400
        %vm455 = vcmp.lt.s32.totalorder %v388, %v400
        %vm456 = vcmp.lt.s32.totalorder %v389, %v400
        %vm457 = vcmp.lt.s32.totalorder %v390, %v400
        %vm458 = vcmp.lt.s32.totalorder %v391, %v400
        %vm459 = vcmp.lt.s32.totalorder %v392, %v400
        %vm460 = vcmp.lt.s32.totalorder %v393, %v400
        %vm461 = vcmp.lt.s32.totalorder %v394, %v400
        %vm462 = vcmp.lt.s32.totalorder %v395, %v400
        %vm463 = vcmp.lt.s32.totalorder %v396, %v400
        %vm464 = vcmp.lt.s32.totalorder %v397, %v400
        %vm465 = vmpackc.low %vm401, %vm401
        %vm466 = vmpackc.low %vm402, %vm402
        %vm467 = vmpackc.low %vm403, %vm403
        %vm468 = vmpackc.low %vm404, %vm404
        %vm469 = vmpackc.low %vm405, %vm405
        %vm470 = vmpackc.low %vm406, %vm406
        %vm471 = vmpackc.low %vm407, %vm407
        %vm472 = vmpackc.low %vm408, %vm408
        %vm473 = vmpackc.low %vm409, %vm409
        %vm474 = vmpackc.low %vm410, %vm410
        %vm475 = vmpackc.low %vm411, %vm411
        %vm476 = vmpackc.low %vm412, %vm412
        %vm477 = vmpackc.low %vm413, %vm413
        %vm478 = vmpackc.low %vm414, %vm414
        %vm479 = vmpackc.low %vm415, %vm415
        %vm480 = vmpackc.low %vm416, %vm416
        %vm481 = vmpackc.low %vm417, %vm417
        %vm482 = vmpackc.low %vm418, %vm418
        %vm483 = vmpackc.low %vm419, %vm419
        %vm484 = vmpackc.low %vm420, %vm420
        %vm485 = vmpackc.low %vm421, %vm421
        %vm486 = vmpackc.low %vm422, %vm422
        %vm487 = vmpackc.low %vm423, %vm423
        %vm488 = vmpackc.low %vm424, %vm424
        %vm489 = vmpackc.low %vm425, %vm425
        %vm490 = vmpackc.low %vm426, %vm426
        %vm491 = vmpackc.low %vm427, %vm427
        %vm492 = vmpackc.low %vm428, %vm428
        %vm493 = vmpackc.low %vm429, %vm429
        %vm494 = vmpackc.low %vm430, %vm430
        %vm495 = vmpackc.low %vm431, %vm431
        %vm496 = vmpackc.low %vm432, %vm432
        %vm497 = vmpackc.low %vm433, %vm433
        %vm498 = vmpackc.low %vm434, %vm434
        %vm499 = vmpackc.low %vm435, %vm435
        %vm500 = vmpackc.low %vm436, %vm436
        %vm501 = vmpackc.low %vm437, %vm437
        %vm502 = vmpackc.low %vm438, %vm438
        %vm503 = vmpackc.low %vm439, %vm439
        %vm504 = vmpackc.low %vm440, %vm440
        %vm505 = vmpackc.low %vm441, %vm441
        %vm506 = vmpackc.low %vm442, %vm442
        %vm507 = vmpackc.low %vm443, %vm443
        %vm508 = vmpackc.low %vm444, %vm444
        %vm509 = vmpackc.low %vm445, %vm445
        %vm510 = vmpackc.low %vm446, %vm446
        %vm511 = vmpackc.low %vm447, %vm447
        %vm512 = vmpackc.low %vm448, %vm448
        %vm513 = vmpackc.low %vm449, %vm449
        %vm514 = vmpackc.low %vm450, %vm450
        %vm515 = vmpackc.low %vm451, %vm451
        %vm516 = vmpackc.low %vm452, %vm452
        %vm517 = vmpackc.low %vm453, %vm453
        %vm518 = vmpackc.low %vm454, %vm454
        %vm519 = vmpackc.low %vm455, %vm455
        %vm520 = vmpackc.low %vm456, %vm456
        %vm521 = vmpackc.low %vm457, %vm457
        %vm522 = vmpackc.low %vm458, %vm458
        %vm523 = vmpackc.low %vm459, %vm459
        %vm524 = vmpackc.low %vm460, %vm460
        %vm525 = vmpackc.low %vm461, %vm461
        %vm526 = vmpackc.low %vm462, %vm462
        %vm527 = vmpackc.low %vm463, %vm463
        %vm528 = vmpackc.low %vm464, %vm464
        %v529 = vsel %vm465, %v269, 0
        %v530 = vsel %vm466, %v270, 0
        %v531 = vsel %vm467, %v271, 0
        %v532 = vsel %vm468, %v272, 0
        %v533 = vsel %vm469, %v273, 0
        %v534 = vsel %vm470, %v274, 0
        %v535 = vsel %vm471, %v275, 0
        %v536 = vsel %vm472, %v276, 0
        %v537 = vsel %vm473, %v277, 0
        %v538 = vsel %vm474, %v278, 0
        %v539 = vsel %vm475, %v279, 0
        %v540 = vsel %vm476, %v280, 0
        %v541 = vsel %vm477, %v281, 0
        %v542 = vsel %vm478, %v282, 0
        %v543 = vsel %vm479, %v283, 0
        %v544 = vsel %vm480, %v284, 0
        %v545 = vsel %vm481, %v285, 0
        %v546 = vsel %vm482, %v286, 0
        %v547 = vsel %vm483, %v287, 0
        %v548 = vsel %vm484, %v288, 0
        %v549 = vsel %vm485, %v289, 0
        %v550 = vsel %vm486, %v290, 0
        %v551 = vsel %vm487, %v291, 0
        %v552 = vsel %vm488, %v292, 0
        %v553 = vsel %vm489, %v293, 0
        %v554 = vsel %vm490, %v294, 0
        %v555 = vsel %vm491, %v295, 0
        %v556 = vsel %vm492, %v296, 0
        %v557 = vsel %vm493, %v297, 0
        %v558 = vsel %vm494, %v298, 0
        %v559 = vsel %vm495, %v299, 0
        %v560 = vsel %vm496, %v300, 0
        %v561 = vsel %vm497, %v301, 0
        %v562 = vsel %vm498, %v302, 0
        %v563 = vsel %vm499, %v303, 0
        %v564 = vsel %vm500, %v304, 0
        %v565 = vsel %vm501, %v305, 0
        %v566 = vsel %vm502, %v306, 0
        %v567 = vsel %vm503, %v307, 0
        %v568 = vsel %vm504, %v308, 0
        %v569 = vsel %vm505, %v309, 0
        %v570 = vsel %vm506, %v310, 0
        %v571 = vsel %vm507, %v311, 0
        %v572 = vsel %vm508, %v312, 0
        %v573 = vsel %vm509, %v313, 0
        %v574 = vsel %vm510, %v314, 0
        %v575 = vsel %vm511, %v315, 0
        %v576 = vsel %vm512, %v316, 0
        %v577 = vsel %vm513, %v317, 0
        %v578 = vsel %vm514, %v318, 0
        %v579 = vsel %vm515, %v319, 0
        %v580 = vsel %vm516, %v320, 0
        %v581 = vsel %vm517, %v321, 0
        %v582 = vsel %vm518, %v322, 0
        %v583 = vsel %vm519, %v323, 0
        %v584 = vsel %vm520, %v324, 0
        %v585 = vsel %vm521, %v325, 0
        %v586 = vsel %vm522, %v326, 0
        %v587 = vsel %vm523, %v327, 0
        %v588 = vsel %vm524, %v328, 0
        %v589 = vsel %vm525, %v329, 0
        %v590 = vsel %vm526, %v330, 0
        %v591 = vsel %vm527, %v331, 0
        %v592 = vsel %vm528, %v332, 0
        %v593 = vld [vmem:[%s236] sm:$0xff]
        %v594 = vld [vmem:[%s236 + $0x8] sm:$0xff]
        %v599 = vunpack.c.l.b16 %v265
        %v600 = vunpack.c.h.b16 %v265
        %v601 = vunpack.c.l.b16 %v266
        %v602 = vunpack.c.h.b16 %v266
        %v603 = vunpack.c.l.b16 %v267
        %v604 = vunpack.c.h.b16 %v267
        %v605 = vunpack.c.l.b16 %v268
        %v606 = vunpack.c.h.b16 %v268
        %v607 = vpack.c.b16 %v603, %v599
        %v608 = vpack.c.b16 %v604, %v600
        %v609 = vpack.c.b16 %v605, %v601
        %v610 = vpack.c.b16 %v606, %v602
        %v679 = vunpack.c.l.b16 %v529
        %v680 = vunpack.c.l.b16 %v530
        %v681 = vunpack.c.l.b16 %v531
        %v682 = vunpack.c.l.b16 %v532
        %v683 = vunpack.c.l.b16 %v533
        %v684 = vunpack.c.l.b16 %v534
        %v685 = vunpack.c.l.b16 %v535
        %v686 = vunpack.c.l.b16 %v536
        %v687 = vunpack.c.l.b16 %v537
        %v688 = vunpack.c.l.b16 %v538
        %v689 = vunpack.c.l.b16 %v539
        %v690 = vunpack.c.l.b16 %v540
        %v691 = vunpack.c.l.b16 %v541
        %v692 = vunpack.c.l.b16 %v542
        %v693 = vunpack.c.l.b16 %v543
        %v694 = vunpack.c.l.b16 %v544
        %v695 = vunpack.c.l.b16 %v545
        %v696 = vunpack.c.l.b16 %v546
        %v697 = vunpack.c.l.b16 %v547
        %v698 = vunpack.c.l.b16 %v548
        %v699 = vunpack.c.l.b16 %v549
        %v700 = vunpack.c.l.b16 %v550
        %v701 = vunpack.c.l.b16 %v551
        %v702 = vunpack.c.l.b16 %v552
        %v703 = vunpack.c.l.b16 %v553
        %v704 = vunpack.c.l.b16 %v554
        %v705 = vunpack.c.l.b16 %v555
        %v706 = vunpack.c.l.b16 %v556
        %v707 = vunpack.c.l.b16 %v557
        %v708 = vunpack.c.l.b16 %v558
        %v709 = vunpack.c.l.b16 %v559
        %v710 = vunpack.c.l.b16 %v560
        %v711 = vunpack.c.l.b16 %v561
        %v712 = vunpack.c.l.b16 %v562
        %v713 = vunpack.c.l.b16 %v563
        %v714 = vunpack.c.l.b16 %v564
        %v715 = vunpack.c.l.b16 %v565
        %v716 = vunpack.c.l.b16 %v566
        %v717 = vunpack.c.l.b16 %v567
        %v718 = vunpack.c.l.b16 %v568
        %v719 = vunpack.c.l.b16 %v569
        %v720 = vunpack.c.l.b16 %v570
        %v721 = vunpack.c.l.b16 %v571
        %v722 = vunpack.c.l.b16 %v572
        %v723 = vunpack.c.l.b16 %v573
        %v724 = vunpack.c.l.b16 %v574
        %v725 = vunpack.c.l.b16 %v575
        %v726 = vunpack.c.l.b16 %v576
        %v727 = vunpack.c.l.b16 %v577
        %v728 = vunpack.c.l.b16 %v578
        %v729 = vunpack.c.l.b16 %v579
        %v730 = vunpack.c.l.b16 %v580
        %v731 = vunpack.c.l.b16 %v581
        %v732 = vunpack.c.l.b16 %v582
        %v733 = vunpack.c.l.b16 %v583
        %v734 = vunpack.c.l.b16 %v584
        %v735 = vunpack.c.l.b16 %v585
        %v736 = vunpack.c.l.b16 %v586
        %v737 = vunpack.c.l.b16 %v587
        %v738 = vunpack.c.l.b16 %v588
        %v739 = vunpack.c.l.b16 %v589
        %v740 = vunpack.c.l.b16 %v590
        %v741 = vunpack.c.l.b16 %v591
        %v742 = vunpack.c.l.b16 %v592
        %v743 = vpack.c.b16 %v680, %v679
        %v744 = vpack.c.b16 %v682, %v681
        %v745 = vpack.c.b16 %v684, %v683
        %v746 = vpack.c.b16 %v686, %v685
        %v747 = vpack.c.b16 %v688, %v687
        %v748 = vpack.c.b16 %v690, %v689
        %v749 = vpack.c.b16 %v692, %v691
        %v750 = vpack.c.b16 %v694, %v693
        %v751 = vpack.c.b16 %v696, %v695
        %v752 = vpack.c.b16 %v698, %v697
        %v753 = vpack.c.b16 %v700, %v699
        %v754 = vpack.c.b16 %v702, %v701
        %v755 = vpack.c.b16 %v704, %v703
        %v756 = vpack.c.b16 %v706, %v705
        %v757 = vpack.c.b16 %v708, %v707
        %v758 = vpack.c.b16 %v710, %v709
        %v759 = vpack.c.b16 %v712, %v711
        %v760 = vpack.c.b16 %v714, %v713
        %v761 = vpack.c.b16 %v716, %v715
        %v762 = vpack.c.b16 %v718, %v717
        %v763 = vpack.c.b16 %v720, %v719
        %v764 = vpack.c.b16 %v722, %v721
        %v765 = vpack.c.b16 %v724, %v723
        %v766 = vpack.c.b16 %v726, %v725
        %v767 = vpack.c.b16 %v728, %v727
        %v768 = vpack.c.b16 %v730, %v729
        %v769 = vpack.c.b16 %v732, %v731
        %v770 = vpack.c.b16 %v734, %v733
        %v771 = vpack.c.b16 %v736, %v735
        %v772 = vpack.c.b16 %v738, %v737
        %v773 = vpack.c.b16 %v740, %v739
        %v774 = vpack.c.b16 %v742, %v741
        %807 = vmatprep.subr.bf16.mxu0 0
        %808 = vmatpush1.bf16.msra.mxu0 %v743
        %809 = vmatprep.subr.bf16.mxu0 0
        %810 = vmatpush1.bf16.msra.mxu0 %v744
        %811 = vmatprep.subr.bf16.mxu0 0
        %812 = vmatpush1.bf16.msra.mxu0 %v745
        %813 = vmatprep.subr.bf16.mxu0 0
        %814 = vmatpush1.bf16.msra.mxu0 %v746
        %815 = vmatprep.subr.bf16.mxu0 0
        %816 = vmatpush1.bf16.msra.mxu0 %v747
        %817 = vmatprep.subr.bf16.mxu0 0
        %818 = vmatpush1.bf16.msra.mxu0 %v748
        %819 = vmatprep.subr.bf16.mxu0 0
        %820 = vmatpush1.bf16.msra.mxu0 %v749
        %821 = vmatprep.subr.bf16.mxu0 0
        %822 = vmatpush1.bf16.msra.mxu0 %v750
        %823 = vmatprep.subr.bf16.mxu0 0
        %824 = vmatpush1.bf16.msra.mxu0 %v751
        %825 = vmatprep.subr.bf16.mxu0 0
        %826 = vmatpush1.bf16.msra.mxu0 %v752
        %827 = vmatprep.subr.bf16.mxu0 0
        %828 = vmatpush1.bf16.msra.mxu0 %v753
        %829 = vmatprep.subr.bf16.mxu0 0
        %830 = vmatpush1.bf16.msra.mxu0 %v754
        %831 = vmatprep.subr.bf16.mxu0 0
        %832 = vmatpush1.bf16.msra.mxu0 %v755
        %833 = vmatprep.subr.bf16.mxu0 0
        %834 = vmatpush1.bf16.msra.mxu0 %v756
        %835 = vmatprep.subr.bf16.mxu0 0
        %836 = vmatpush1.bf16.msra.mxu0 %v757
        %837 = vmatprep.subr.bf16.mxu0 0
        %838 = vmatpush1.bf16.msra.mxu0 %v758
        %839 = vmatprep.mubr.bf16.mxu0 %v608
        %840 = vmatmul.mubr.bf16.gmra.mrb[0].mxu0 %v607
        %v841 = vpop.f32.mrb[0].mxu0
        %v842 = vadd.f32 0.0, %v841
        %v843 = vpop.f32.mrb[0].mxu0
        %v844 = vpop.f32.mrb[0].mxu0
        %v845 = vadd.f32 0.0, %v844
        %v846 = vpop.f32.mrb[0].mxu0
        %847 = vdwg.mxu0
        %848 = vmatprep.subr.bf16.mxu0 0
        %849 = vmatpush1.bf16.msra.mxu0 %v759
        %850 = vmatprep.subr.bf16.mxu0 0
        %851 = vmatpush1.bf16.msra.mxu0 %v760
        %852 = vmatprep.subr.bf16.mxu0 0
        %853 = vmatpush1.bf16.msra.mxu0 %v761
        %854 = vmatprep.subr.bf16.mxu0 0
        %855 = vmatpush1.bf16.msra.mxu0 %v762
        %856 = vmatprep.subr.bf16.mxu0 0
        %857 = vmatpush1.bf16.msra.mxu0 %v763
        %858 = vmatprep.subr.bf16.mxu0 0
        %859 = vmatpush1.bf16.msra.mxu0 %v764
        %860 = vmatprep.subr.bf16.mxu0 0
        %861 = vmatpush1.bf16.msra.mxu0 %v765
        %862 = vmatprep.subr.bf16.mxu0 0
        %863 = vmatpush1.bf16.msra.mxu0 %v766
        %864 = vmatprep.subr.bf16.mxu0 0
        %865 = vmatpush1.bf16.msra.mxu0 %v767
        %866 = vmatprep.subr.bf16.mxu0 0
        %867 = vmatpush1.bf16.msra.mxu0 %v768
        %868 = vmatprep.subr.bf16.mxu0 0
        %869 = vmatpush1.bf16.msra.mxu0 %v769
        %870 = vmatprep.subr.bf16.mxu0 0
        %871 = vmatpush1.bf16.msra.mxu0 %v770
        %872 = vmatprep.subr.bf16.mxu0 0
        %873 = vmatpush1.bf16.msra.mxu0 %v771
        %874 = vmatprep.subr.bf16.mxu0 0
        %875 = vmatpush1.bf16.msra.mxu0 %v772
        %876 = vmatprep.subr.bf16.mxu0 0
        %877 = vmatpush1.bf16.msra.mxu0 %v773
        %878 = vmatprep.subr.bf16.mxu0 0
        %879 = vmatpush1.bf16.msra.mxu0 %v774
        %880 = vmatprep.mubr.bf16.mxu0 %v610
        %881 = vmatmul.mubr.bf16.gmra.mrb[0].mxu0 %v609
        %v882 = vpop.f32.mrb[0].mxu0
        %v883 = vadd.f32 %v842, %v882
        %v884 = vpop.f32.mrb[0].mxu0
        %v885 = vpop.f32.mrb[0].mxu0
        %v886 = vadd.f32 %v845, %v885
        %v887 = vpop.f32.mrb[0].mxu0
        %888 = vdwg.mxu0
        %v889 = vadd.f32 %v593, %v883
        %v890 = vadd.f32 %v594, %v886
        %891 = vst [vmem:[%s236] sm:$0xff] %v889
        %892 = vst [vmem:[%s236 + $0x8] sm:$0xff] %v890
        %s893 = sand.u32 %s116, 1
        %s894 = scalar_lea.sflag [#allocation4], %s893
        %s895 = sand.u32 %s116, 1
        %s896 = smul.addr %s895, 16
        %s897 = scalar_lea.vmem [#allocation7], %s896
        // Predicated region
        $region45: #{tpu_custom_call.1} parent=31 // pred_check
          %p898 = pneg %p126
        $region46: #{tpu_custom_call.1} parent=31 // pred_check_branch
          %900 = sbr.rel (%p898) target = $region48
        $region47: #{tpu_custom_call.1} parent=31 // pred_region
          %s902 = ssub.s32 256, 256
          %903 = vsyncadd %s894, %s902
          %s904 = smul.addr %s25, 128
          %s905 = scalar_lea.hbm %s3, %s904
          %s906 = sshll.u32 %s897, 4
          %s907 = int_to_ptr.vmem [resolvable:$true] %s906
          %912 = dma.vmem_to_hbm [thread:$0]  %s907, 256, %s905, %s894, 128, 256, 8
        $region48: #{tpu_custom_call.1} parent=31 // pred_fallthru
          _
      $region32: #{tpu_custom_call.1} parent=5 // pred_fallthru
        _
      %p913 = scmp.le.s32.totalorder 2, %s16
      // Predicated region
      $region49: #{tpu_custom_call.1} parent=5 // pred_check
        %p914 = pneg %p913
      $region50: #{tpu_custom_call.1} parent=5 // pred_check_branch
        %916 = sbr.rel (%p914) target = $region52
      $region51: #{tpu_custom_call.1} parent=5 // pred_region
        %s917 = ssub.s32 %s16, 2
        // Predicated region
        $region53: #{tpu_custom_call.1} parent=51 // pred_check
          %p918 = pneg %p132
        $region54: #{tpu_custom_call.1} parent=51 // pred_check_branch
          %920 = sbr.rel (%p918) target = $region56
        $region55: #{tpu_custom_call.1} parent=51 // pred_region
          %s921 = sand.u32 %s117, 1
          %s922 = scalar_lea.sflag [#allocation4], %s921
          %s923 = sand.u32 %s117, 1
          %s924 = smul.addr %s923, 16
          %s925 = scalar_lea.vmem [#allocation7], %s924
          %926 = dma.done %s922, 256
        $region56: #{tpu_custom_call.1} parent=51 // pred_fallthru
          _
      $region52: #{tpu_custom_call.1} parent=5 // pred_fallthru
        _
    $region6: #{tpu_custom_call.1} parent=1 // loop_footer
      %s20 = sadd.s32 1, %s16
    $region7: #{tpu_custom_call.1} parent=1 // loop_footer_branch
      %15 = sbr.rel target = $region3
    $region8: #{tpu_custom_call.1} parent=1 // loop_exit
      _
    %927 = vsyncpa [#allocation3], 1
    %s928 = scalar_lea.sflag [#allocation3], 1
    %929 = vsyncpa %s928, 1
    %930 = vsyncpa [#allocation6], 1
    %s931 = scalar_lea.sflag [#allocation6], 1
    %932 = vsyncpa %s931, 1
    %933 = vsyncpa [#allocation4], 1
    %s934 = scalar_lea.sflag [#allocation4], 1
    %935 = vsyncpa %s934, 1

</llo_original>
